<compile_context>
chip_gen: v6e
topology: v6e:2x2x1
jax: 0.10.0
libtpu: 0.0.40
codegen_flags: <defaults>
</compile_context>

<pallas_src>
from functools import partial
from typing import NamedTuple

import jax
import jax.numpy as jnp
from jax.experimental import pallas as pl
from jax.experimental.pallas import tpu as pltpu


# ---------------------------------------------------------------------------
# Kernel
# ---------------------------------------------------------------------------
def gated_head_kernel(x_ref, w_ref, b_ref, o_ref, *, approx_reciprocal=True):
    # x_ref: (bm, F) native dtype | w_ref: (F, 2*tn) bf16 | b_ref: (1, 2*tn) f32
    # o_ref: (bm, tn)
    tn = o_ref.shape[-1]

    # In-kernel bf16 cast (VPU work, hidden under MXU/EUP slack) -> single MXU matmul
    # with f32 accumulation; bias add and all gate math stay in f32.
    x = x_ref[...].astype(jnp.bfloat16)
    y = jnp.dot(x, w_ref[...], preferred_element_type=jnp.float32) + b_ref[...]

    # Lane-aligned split (tn is a multiple of 128).
    a = y[:, :tn]
    g = y[:, tn:]

    # sigmoid(a) * sigmoid(g) == 1 / ((1 + e^-a) * (1 + e^-g)): 2 exp + 1 reciprocal (EUP).
    denom = (1.0 + jnp.exp(-a)) * (1.0 + jnp.exp(-g))
    if approx_reciprocal:
        out = pl.reciprocal(denom, approx=True)
    else:
        out = 1.0 / denom
    o_ref[...] = out.astype(o_ref.dtype)


# ---------------------------------------------------------------------------
# One-time parameter layout (hoisted out of the per-call hot path)
# ---------------------------------------------------------------------------
def _round_up(x, m):
    return (x + m - 1) // m * m


class GatedHeadParams(NamedTuple):
    w_packed: jax.Array   # (F, n_tiles * 2 * tn) bf16 -- [act_j | gate_j] per class tile
    b_packed: jax.Array   # (1, n_tiles * 2 * tn) f32  -- matching fused bias (pads are 0)
    num_classes: int
    tn: int               # class-tile width (multiple of 128)
    n_tiles: int


_WEIGHT_VMEM_BUDGET = 24 << 20   # bytes of bf16 weights allowed per resident VMEM tile


def prepare_gated_head_params(w, b, num_classes, *, weight_budget_bytes=_WEIGHT_VMEM_BUDGET):
    """w: (2*C, F) torch.nn.Linear weight layout; b: (2*C,).

    The fused weight is transposed to (F, ...) and grouped per class tile j as
    [act cols j*tn .. j*tn+tn | gate cols j*tn .. j*tn+tn] so the act/gate split is
    local to one (F, 2*tn) VMEM block.  With n_tiles == 1 this reduces to a single
    resident [act | gate] slab.
    """
    two_c, F = w.shape
    C = num_classes
    assert two_c == 2 * C
    Cp = _round_up(max(C, 1), 128)

    # Class-tile width: keep each (F, 2*tn) bf16 weight block under the VMEM budget.
    full_bytes = F * 2 * Cp * 2
    n_tiles = max(1, pl.cdiv(full_bytes, weight_budget_bytes))
    tn = _round_up(pl.cdiv(Cp, n_tiles), 128)
    n_tiles = pl.cdiv(Cp, tn)

    wt = jnp.transpose(w).astype(jnp.bfloat16)   # (F, 2*C)
    bf = b.astype(jnp.float32)

    w_packed = jnp.zeros((F, n_tiles * 2 * tn), dtype=jnp.bfloat16)
    b_packed = jnp.zeros((1, n_tiles * 2 * tn), dtype=jnp.float32)
    for j in range(n_tiles):
        lo = j * tn
        hi = min((j + 1) * tn, C)
        if hi <= lo:
            break
        n = hi - lo
        col = j * 2 * tn
        w_packed = w_packed.at[:, col:col + n].set(wt[:, lo:hi])                    # act
        w_packed = w_packed.at[:, col + tn:col + tn + n].set(wt[:, C + lo:C + hi])  # gate
        b_packed = b_packed.at[:, col:col + n].set(bf[lo:hi])
        b_packed = b_packed.at[:, col + tn:col + tn + n].set(bf[C + lo:C + hi])
    return GatedHeadParams(w_packed, b_packed, C, tn, n_tiles)


# ---------------------------------------------------------------------------
# Per-generation batch-tile selection
# ---------------------------------------------------------------------------
def _tpu_cores_per_chip():
    """2 TensorCores on v7x, 1 on v5e/v6e; default to 1 if undetectable."""
    try:
        kind = jax.devices()[0].device_kind.lower()
    except Exception:
        return 1
    return 2 if "7" in kind else 1


def _pick_block_m(B, n_cores):
    """Multiple of 16 (bf16 sublane packing), capped at 512.

    Single-TC chips (v5e/v6e): one big tile -- each extra grid step only adds ~0.35us
    and shrinks the MXU M extent.  v7x (2 TCs): choose bm so the step count is even
    and balanced across the two cores (dimension_semantics shards the batch axis).
    """
    cap = 512
    if B <= 16:
        return B                      # full-dim block; (8,128) rule doesn't apply
    if n_cores <= 1:
        return B if B <= cap else cap
    for steps in (2, 4, 8, 16, 32, 64):
        bm = _round_up(pl.cdiv(B, steps), 16)
        if bm <= cap:
            return bm
    return cap


# ---------------------------------------------------------------------------
# Wrapper
# ---------------------------------------------------------------------------
def gated_head(x, params: GatedHeadParams, *, block_m=None, out_dtype=None,
               approx_reciprocal=True):
    """x: (B, F) -> (B, num_classes).  params from prepare_gated_head_params."""
    B, F = x.shape
    C, tn, n_tiles = params.num_classes, params.tn, params.n_tiles
    assert params.w_packed.shape == (F, n_tiles * 2 * tn)
    out_dtype = x.dtype if out_dtype is None else jnp.dtype(out_dtype)

    bm = block_m if block_m is not None else _pick_block_m(B, _tpu_cores_per_chip())
    grid = (pl.cdiv(B, bm), n_tiles)

    resident = n_tiles == 1   # weights/bias are grid-constant -> single buffer suffices
    if resident:
        w_spec = pl.BlockSpec((F, 2 * tn), lambda i, j: (0, 0), pipeline_mode=pl.Buffered(1))
        b_spec = pl.BlockSpec((1, 2 * tn), lambda i, j: (0, 0), pipeline_mode=pl.Buffered(1))
    else:
        w_spec = pl.BlockSpec((F, 2 * tn), lambda i, j: (0, j))
        b_spec = pl.BlockSpec((1, 2 * tn), lambda i, j: (0, j))

    x_bytes = jnp.dtype(x.dtype).itemsize
    o_bytes = jnp.dtype(out_dtype).itemsize
    w_bufs = 1 if resident else 2
    vmem_bytes = (
        2 * bm * F * x_bytes          # x tiles (double-buffered, native dtype)
        + w_bufs * F * 2 * tn * 2     # bf16 weight tile(s)
        + w_bufs * 2 * tn * 4         # f32 bias tile(s)
        + 2 * bm * tn * o_bytes       # output tiles (double-buffered)
        + bm * F * 2                  # in-kernel bf16 copy of the x tile
        + bm * 2 * tn * 4             # f32 matmul result y
        + 3 * bm * tn * 4             # exp / denom / reciprocal temporaries
        + (2 << 20)                   # headroom
    )
    vmem_limit = int(min(max(vmem_bytes, 16 << 20), 64 << 20))

    out_padded = pl.pallas_call(
        partial(gated_head_kernel, approx_reciprocal=approx_reciprocal),
        out_shape=jax.ShapeDtypeStruct((B, n_tiles * tn), out_dtype),
        grid_spec=pltpu.PrefetchScalarGridSpec(
            num_scalar_prefetch=0,
            grid=grid,
            in_specs=[
                pl.BlockSpec((bm, F), lambda i, j: (i, 0)),   # x tile (streamed)
                w_spec,                                       # fused weight tile
                b_spec,                                       # fused bias tile
            ],
            out_specs=pl.BlockSpec((bm, tn), lambda i, j: (i, j)),
        ),
        compiler_params=pltpu.CompilerParams(
            dimension_semantics=("parallel", "parallel"),
            vmem_limit_bytes=vmem_limit,
        ),
    )(x, params.w_packed, params.b_packed)

    # Output column == class index, so the slice just drops the lane padding.
    # TODO(synk): store/epilogue-bound callers should consume out_padded directly and
    # fuse this slice into the consumer instead of paying an extra copy pass.
    return out_padded[:, :C]


# ---------------------------------------------------------------------------
# Pure-JAX reference (matches the PyTorch forward in f32)
# ---------------------------------------------------------------------------
def gated_head_ref(x, w, b, num_classes):
    y = x @ w.T + b
    return jax.nn.sigmoid(y[:, :num_classes]) * jax.nn.sigmoid(y[:, num_classes:])


if __name__ == "__main__":
    # Small but TPU-relevant shapes: F a multiple of 128, C deliberately NOT a multiple
    # of 128 (exercises the lane-padding path), B exercises the per-generation bm logic.
    B, F, C = 64, 256, 100

    key = jax.random.PRNGKey(0)
    kx, kw, kb = jax.random.split(key, 3)

    x = jax.random.normal(kx, (B, F), dtype=jnp.float32)
    bound = 1.0 / (F ** 0.5)
    w = jax.random.uniform(kw, (2 * C, F), minval=-bound, maxval=bound, dtype=jnp.float32)
    b = jax.random.uniform(kb, (2 * C,), minval=-bound, maxval=bound, dtype=jnp.float32)

    # One-time weight layout (cached with the module in real use).
    params = prepare_gated_head_params(w, b, C)

    out = gated_head(x, params)
    out = jax.block_until_ready(out)

    ref = gated_head_ref(x, w, b, C)
    assert out.shape == (B, C)
    # bf16 MXU inputs + approx EUP reciprocal -> loose-but-tight-enough tolerance vs f32.
    assert jnp.allclose(out, ref, atol=1e-2, rtol=1e-2), float(jnp.max(jnp.abs(out - ref)))
    print("KERNEL_OK")
</pallas_src>

<mosaic_0001>
module attributes {stable_mosaic.version = 11 : i64} {
  func.func @gated_head_kernel(%arg0: i32, %arg1: i32, %arg2: memref<64x256xf32, #tpu.memory_space<vmem>>, %arg3: memref<256x256xbf16, #tpu.memory_space<vmem>>, %arg4: memref<1x256xf32, #tpu.memory_space<vmem>>, %arg5: memref<64x128xf32, #tpu.memory_space<vmem>>) attributes {dimension_semantics = [#tpu.dimension_semantics<parallel>, #tpu.dimension_semantics<parallel>], iteration_bounds = array<i64: 1, 1>, scalar_prefetch = 0 : i64, scratch_operands = 0 : i64, tpu.core_type = #tpu.core_type<tc>, window_params = [{transform_indices = @transform_0, window_bounds = array<i64: 64, 256>}, {pipeline_mode = #tpu.pipeline_mode<synchronous>, transform_indices = @transform_1, window_bounds = array<i64: 256, 256>}, {pipeline_mode = #tpu.pipeline_mode<synchronous>, transform_indices = @transform_2, window_bounds = array<i64: 1, 256>}, {transform_indices = @transform_3, window_bounds = array<i64: 64, 128>}]} {
    %c0 = arith.constant 0 : index
    %c0_0 = arith.constant 0 : index
    %0 = vector.load %arg2[%c0, %c0_0] : memref<64x256xf32, #tpu.memory_space<vmem>>, vector<64x256xf32>
    %1 = arith.truncf %0 : vector<64x256xf32> to vector<64x256xbf16>
    %c0_1 = arith.constant 0 : index
    %c0_2 = arith.constant 0 : index
    %2 = vector.load %arg3[%c0_1, %c0_2] : memref<256x256xbf16, #tpu.memory_space<vmem>>, vector<256x256xbf16>
    %cst = arith.constant dense<0.000000e+00> : vector<64x256xf32>
    %3 = tpu.matmul %1, %2, %cst {dimension_numbers = #tpu.dot_dimension_numbers<[1], [0], [0], [1], [0, 0, 1, 1], [], []>} : vector<64x256xbf16>, vector<256x256xbf16>, vector<64x256xf32> -> vector<64x256xf32>
    %c0_3 = arith.constant 0 : index
    %c0_4 = arith.constant 0 : index
    %4 = vector.load %arg4[%c0_3, %c0_4] : memref<1x256xf32, #tpu.memory_space<vmem>>, vector<1x256xf32>
    %5 = vector.broadcast %4 : vector<1x256xf32> to vector<64x256xf32>
    %6 = arith.addf %3, %5 : vector<64x256xf32>
    %7 = vector.extract_strided_slice %6 {offsets = [0, 0], sizes = [64, 128], strides = [1, 1]} : vector<64x256xf32> to vector<64x128xf32>
    %8 = vector.extract_strided_slice %6 {offsets = [0, 128], sizes = [64, 128], strides = [1, 1]} : vector<64x256xf32> to vector<64x128xf32>
    %cst_5 = arith.constant 0.000000e+00 : f32
    %9 = vector.broadcast %cst_5 : f32 to vector<64x128xf32>
    %10 = arith.subf %9, %7 : vector<64x128xf32>
    %11 = math.exp %10 : vector<64x128xf32>
    %cst_6 = arith.constant 1.000000e+00 : f32
    %12 = vector.broadcast %cst_6 : f32 to vector<64x128xf32>
    %13 = arith.addf %12, %11 : vector<64x128xf32>
    %cst_7 = arith.constant 0.000000e+00 : f32
    %14 = vector.broadcast %cst_7 : f32 to vector<64x128xf32>
    %15 = arith.subf %14, %8 : vector<64x128xf32>
    %16 = math.exp %15 : vector<64x128xf32>
    %cst_8 = arith.constant 1.000000e+00 : f32
    %17 = vector.broadcast %cst_8 : f32 to vector<64x128xf32>
    %18 = arith.addf %17, %16 : vector<64x128xf32>
    %19 = arith.mulf %13, %18 : vector<64x128xf32>
    %20 = tpu.reciprocal %19 {approx = true} : vector<64x128xf32> -> vector<64x128xf32>
    %c0_9 = arith.constant 0 : index
    %c0_10 = arith.constant 0 : index
    %21 = vector.load %arg5[%c0_9, %c0_10] : memref<64x128xf32, #tpu.memory_space<vmem>>, vector<64x128xf32>
    tpu.vector_store %arg5[%c0_9, %c0_10], %20 {strides = array<i32>} : memref<64x128xf32, #tpu.memory_space<vmem>>, vector<64x128xf32>,
    return
  }
  func.func @transform_0(%arg0: i32, %arg1: i32) -> (i32, i32) {
    %c0_i32 = arith.constant 0 : i32
    %c0_i32_0 = arith.constant 0 : i32
    return %arg0, %c0_i32 : i32, i32
  }
  func.func @transform_1(%arg0: i32, %arg1: i32) -> (i32, i32) {
    %c0_i32 = arith.constant 0 : i32
    %c0_i32_0 = arith.constant 0 : i32
    %c0_i32_1 = arith.constant 0 : i32
    return %c0_i32, %c0_i32_0 : i32, i32
  }
  func.func @transform_2(%arg0: i32, %arg1: i32) -> (i32, i32) {
    %c0_i32 = arith.constant 0 : i32
    %c0_i32_0 = arith.constant 0 : i32
    %c0_i32_1 = arith.constant 0 : i32
    return %c0_i32, %c0_i32_0 : i32, i32
  }
  func.func @transform_3(%arg0: i32, %arg1: i32) -> (i32, i32) {
    %c0_i32 = arith.constant 0 : i32
    return %arg0, %arg1 : i32, i32
  }
}

</mosaic_0001>

<llo_original>
// kernel: tpu_custom_call.1
$region0: #{tpu_custom_call.1}
  #allocation0 [shape = 'u32[]', space=smem, size = 0x4, offset = 0x4, fixed_abs, tag = 'smem constant byte address 0x4 - core index']
  #allocation1 [shape = 'u32[144,128]{1,0:T(1,128)}', space=vmem, size = 0x12000, scoped, tag = 'internal scratch']
  %s0 = inlined_call_operand.hbm [shape: f32[64,256], index: 0, kind: input, shape index: {}]
  %s1 = inlined_call_operand.hbm [shape: bf16[256,256], index: 1, kind: input, shape index: {}]
  %s2 = inlined_call_operand.vmem [shape: f32[1,256], index: 2, kind: input, shape index: {}]
  %s3 = inlined_call_operand.hbm [shape: f32[64,128], index: 3, kind: output, shape index: {}]
  %s4 = sld [smem:[#allocation0]]
  $region30: #{tpu_custom_call.1} parent=0
    _
  %s6 = ssub.s32 1, %s4
  %s7 = scalar_select 0, %s6, %s4
  $region1: #{tpu_custom_call.1} parent=0
    #allocation2 [shape = 'u8[65536]{0}', space=vmem, size = 0x10000, scoped, tag = 'input window, operand 0, single buffered']
    #allocation3 [shape = 's32[1]{0}', space=sflag, size = 0x4, scoped, tag = 'scoped memory for tpu_custom_call.1']
    #allocation4 [shape = 's32[1]{0}', space=sflag, size = 0x4, scoped, tag = 'scoped memory for tpu_custom_call.1']
    #allocation5 [shape = 'u8[131072]{0}', space=vmem, size = 0x20000, scoped, tag = 'input window, operand 1, single buffered']
    #allocation6 [shape = 's32[1]{0}', space=sflag, size = 0x4, scoped, tag = 'scoped memory for tpu_custom_call.1']
    #allocation7 [shape = 'u8[32768]{0}', space=vmem, size = 0x8000, scoped, tag = 'output window, operand 0, single buffered']
    %8 = vsyncpa [#allocation3], 0
    %9 = vsyncpa [#allocation6], 0
    %10 = vsyncpa [#allocation4], 0
    // Predicated region
    $region2: #{tpu_custom_call.1} parent=1 // pred_check
      _
    $region3: #{tpu_custom_call.1} parent=1 // pred_check_branch
      %12 = sbr.rel (0) target = $region5
    $region4: #{tpu_custom_call.1} parent=1 // pred_region
      %s14 = ssub.s32 2048, 2048
      %15 = vsyncadd [#allocation3], %s14
      %s16 = sshll.u32 [#allocation2], 4
      %s17 = int_to_ptr.vmem [resolvable:$true] %s16
      %22 = dma.hbm_to_vmem [thread:$0]  %s0, 2048, %s17, [#allocation3], 256, 256, 16
    $region5: #{tpu_custom_call.1} parent=1 // pred_fallthru
      _
    // Predicated region
    $region6: #{tpu_custom_call.1} parent=1 // pred_check
      _
    $region7: #{tpu_custom_call.1} parent=1 // pred_check_branch
      %24 = sbr.rel (0) target = $region9
    $region8: #{tpu_custom_call.1} parent=1 // pred_region
      %s26 = ssub.s32 4096, 4096
      %27 = vsyncadd [#allocation6], %s26
      %s28 = sshll.u32 [#allocation5], 4
      %s29 = int_to_ptr.vmem [resolvable:$true] %s28
      %34 = dma.hbm_to_vmem [thread:$0]  %s1, 4096, %s29, [#allocation6], 128, 128, 8
    $region9: #{tpu_custom_call.1} parent=1 // pred_fallthru
      _
    // Predicated region
    $region10: #{tpu_custom_call.1} parent=1 // pred_check
      _
    $region11: #{tpu_custom_call.1} parent=1 // pred_check_branch
      %36 = sbr.rel (0) target = $region13
    $region12: #{tpu_custom_call.1} parent=1 // pred_region
      _
    $region13: #{tpu_custom_call.1} parent=1 // pred_fallthru
      _
    // Predicated region
    $region14: #{tpu_custom_call.1} parent=1 // pred_check
      _
    $region15: #{tpu_custom_call.1} parent=1 // pred_check_branch
      %38 = sbr.rel (0) target = $region17
    $region16: #{tpu_custom_call.1} parent=1 // pred_region
      %39 = dma.done [#allocation3], 2048
    $region17: #{tpu_custom_call.1} parent=1 // pred_fallthru
      _
    // Predicated region
    $region18: #{tpu_custom_call.1} parent=1 // pred_check
      _
    $region19: #{tpu_custom_call.1} parent=1 // pred_check_branch
      %41 = sbr.rel (0) target = $region21
    $region20: #{tpu_custom_call.1} parent=1 // pred_region
      %42 = dma.done [#allocation6], 4096
    $region21: #{tpu_custom_call.1} parent=1 // pred_fallthru
      _
    %v43 = vld [vmem:[#allocation2] sm:$0xff]
    %v44 = vld [vmem:[#allocation2 + $0x8] sm:$0xff]
    %v45 = vld [vmem:[#allocation2 + $0x10] sm:$0xff]
    %v46 = vld [vmem:[#allocation2 + $0x18] sm:$0xff]
    %v47 = vld [vmem:[#allocation2 + $0x20] sm:$0xff]
    %v48 = vld [vmem:[#allocation2 + $0x28] sm:$0xff]
    %v49 = vld [vmem:[#allocation2 + $0x30] sm:$0xff]
    %v50 = vld [vmem:[#allocation2 + $0x38] sm:$0xff]
    %v51 = vld [vmem:[#allocation2 + $0x40] sm:$0xff]
    %v52 = vld [vmem:[#allocation2 + $0x48] sm:$0xff]
    %v53 = vld [vmem:[#allocation2 + $0x50] sm:$0xff]
    %v54 = vld [vmem:[#allocation2 + $0x58] sm:$0xff]
    %v55 = vld [vmem:[#allocation2 + $0x60] sm:$0xff]
    %v56 = vld [vmem:[#allocation2 + $0x68] sm:$0xff]
    %v57 = vld [vmem:[#allocation2 + $0x70] sm:$0xff]
    %v58 = vld [vmem:[#allocation2 + $0x78] sm:$0xff]
    %v59 = vpack.c.bf16 %v45, %v43
    %v60 = vpack.c.bf16 %v46, %v44
    %v61 = vpack.c.bf16 %v49, %v47
    %v62 = vpack.c.bf16 %v50, %v48
    %v63 = vpack.c.bf16 %v53, %v51
    %v64 = vpack.c.bf16 %v54, %v52
    %v65 = vpack.c.bf16 %v57, %v55
    %v66 = vpack.c.bf16 %v58, %v56
    %v67 = vld [vmem:[#allocation5] sm:$0xff]
    %v68 = vld [vmem:[#allocation5 + $0x8] sm:$0xff]
    %v69 = vld [vmem:[#allocation5 + $0x10] sm:$0xff]
    %v70 = vld [vmem:[#allocation5 + $0x18] sm:$0xff]
    %v71 = vld [vmem:[#allocation5 + $0x20] sm:$0xff]
    %v72 = vld [vmem:[#allocation5 + $0x28] sm:$0xff]
    %v73 = vld [vmem:[#allocation5 + $0x30] sm:$0xff]
    %v74 = vld [vmem:[#allocation5 + $0x38] sm:$0xff]
    %v75 = vld [vmem:[#allocation5 + $0x40] sm:$0xff]
    %v76 = vld [vmem:[#allocation5 + $0x48] sm:$0xff]
    %v77 = vld [vmem:[#allocation5 + $0x50] sm:$0xff]
    %v78 = vld [vmem:[#allocation5 + $0x58] sm:$0xff]
    %v79 = vld [vmem:[#allocation5 + $0x60] sm:$0xff]
    %v80 = vld [vmem:[#allocation5 + $0x68] sm:$0xff]
    %v81 = vld [vmem:[#allocation5 + $0x70] sm:$0xff]
    %v82 = vld [vmem:[#allocation5 + $0x78] sm:$0xff]
    %v83 = vld [vmem:[#allocation5 + $0x80] sm:$0xff]
    %v84 = vld [vmem:[#allocation5 + $0x88] sm:$0xff]
    %v85 = vld [vmem:[#allocation5 + $0x90] sm:$0xff]
    %v86 = vld [vmem:[#allocation5 + $0x98] sm:$0xff]
    %v87 = vld [vmem:[#allocation5 + $0xa0] sm:$0xff]
    %v88 = vld [vmem:[#allocation5 + $0xa8] sm:$0xff]
    %v89 = vld [vmem:[#allocation5 + $0xb0] sm:$0xff]
    %v90 = vld [vmem:[#allocation5 + $0xb8] sm:$0xff]
    %v91 = vld [vmem:[#allocation5 + $0xc0] sm:$0xff]
    %v92 = vld [vmem:[#allocation5 + $0xc8] sm:$0xff]
    %v93 = vld [vmem:[#allocation5 + $0xd0] sm:$0xff]
    %v94 = vld [vmem:[#allocation5 + $0xd8] sm:$0xff]
    %v95 = vld [vmem:[#allocation5 + $0xe0] sm:$0xff]
    %v96 = vld [vmem:[#allocation5 + $0xe8] sm:$0xff]
    %v97 = vld [vmem:[#allocation5 + $0xf0] sm:$0xff]
    %v98 = vld [vmem:[#allocation5 + $0xf8] sm:$0xff]
    %v99 = vld [vmem:[%s2] sm:$0x3]
    %v101 = vlaneseq
    %v102 = vshrl.u32 %v101, 7
    %v103 = vsub.s32 0, %v102
    %v104 = vrot.slane %v99, %v103
    %v105 = vlaneseq
    %v106 = vshrl.u32 %v105, 7
    %v107 = vsub.s32 1, %v106
    %v108 = vrot.slane %v99, %v107
    %v143 = vunpack.c.l.b16 %v67
    %v144 = vunpack.c.h.b16 %v67
    %v145 = vunpack.c.l.b16 %v68
    %v146 = vunpack.c.h.b16 %v68
    %v147 = vunpack.c.l.b16 %v69
    %v148 = vunpack.c.h.b16 %v69
    %v149 = vunpack.c.l.b16 %v70
    %v150 = vunpack.c.h.b16 %v70
    %v151 = vunpack.c.l.b16 %v71
    %v152 = vunpack.c.h.b16 %v71
    %v153 = vunpack.c.l.b16 %v72
    %v154 = vunpack.c.h.b16 %v72
    %v155 = vunpack.c.l.b16 %v73
    %v156 = vunpack.c.h.b16 %v73
    %v157 = vunpack.c.l.b16 %v74
    %v158 = vunpack.c.h.b16 %v74
    %v159 = vunpack.c.l.b16 %v75
    %v160 = vunpack.c.h.b16 %v75
    %v161 = vunpack.c.l.b16 %v76
    %v162 = vunpack.c.h.b16 %v76
    %v163 = vunpack.c.l.b16 %v77
    %v164 = vunpack.c.h.b16 %v77
    %v165 = vunpack.c.l.b16 %v78
    %v166 = vunpack.c.h.b16 %v78
    %v167 = vunpack.c.l.b16 %v79
    %v168 = vunpack.c.h.b16 %v79
    %v169 = vunpack.c.l.b16 %v80
    %v170 = vunpack.c.h.b16 %v80
    %v171 = vunpack.c.l.b16 %v81
    %v172 = vunpack.c.h.b16 %v81
    %v173 = vunpack.c.l.b16 %v82
    %v174 = vunpack.c.h.b16 %v82
    %v175 = vunpack.c.l.b16 %v83
    %v176 = vunpack.c.h.b16 %v83
    %v177 = vunpack.c.l.b16 %v84
    %v178 = vunpack.c.h.b16 %v84
    %v179 = vunpack.c.l.b16 %v85
    %v180 = vunpack.c.h.b16 %v85
    %v181 = vunpack.c.l.b16 %v86
    %v182 = vunpack.c.h.b16 %v86
    %v183 = vunpack.c.l.b16 %v87
    %v184 = vunpack.c.h.b16 %v87
    %v185 = vunpack.c.l.b16 %v88
    %v186 = vunpack.c.h.b16 %v88
    %v187 = vunpack.c.l.b16 %v89
    %v188 = vunpack.c.h.b16 %v89
    %v189 = vunpack.c.l.b16 %v90
    %v190 = vunpack.c.h.b16 %v90
    %v191 = vunpack.c.l.b16 %v91
    %v192 = vunpack.c.h.b16 %v91
    %v193 = vunpack.c.l.b16 %v92
    %v194 = vunpack.c.h.b16 %v92
    %v195 = vunpack.c.l.b16 %v93
    %v196 = vunpack.c.h.b16 %v93
    %v197 = vunpack.c.l.b16 %v94
    %v198 = vunpack.c.h.b16 %v94
    %v199 = vunpack.c.l.b16 %v95
    %v200 = vunpack.c.h.b16 %v95
    %v201 = vunpack.c.l.b16 %v96
    %v202 = vunpack.c.h.b16 %v96
    %v203 = vunpack.c.l.b16 %v97
    %v204 = vunpack.c.h.b16 %v97
    %v205 = vunpack.c.l.b16 %v98
    %v206 = vunpack.c.h.b16 %v98
    %v207 = vpack.c.b16 %v145, %v143
    %v208 = vpack.c.b16 %v146, %v144
    %v209 = vpack.c.b16 %v149, %v147
    %v210 = vpack.c.b16 %v150, %v148
    %v211 = vpack.c.b16 %v153, %v151
    %v212 = vpack.c.b16 %v154, %v152
    %v213 = vpack.c.b16 %v157, %v155
    %v214 = vpack.c.b16 %v158, %v156
    %v215 = vpack.c.b16 %v161, %v159
    %v216 = vpack.c.b16 %v162, %v160
    %v217 = vpack.c.b16 %v165, %v163
    %v218 = vpack.c.b16 %v166, %v164
    %v219 = vpack.c.b16 %v169, %v167
    %v220 = vpack.c.b16 %v170, %v168
    %v221 = vpack.c.b16 %v173, %v171
    %v222 = vpack.c.b16 %v174, %v172
    %v223 = vpack.c.b16 %v177, %v175
    %v224 = vpack.c.b16 %v178, %v176
    %v225 = vpack.c.b16 %v181, %v179
    %v226 = vpack.c.b16 %v182, %v180
    %v227 = vpack.c.b16 %v185, %v183
    %v228 = vpack.c.b16 %v186, %v184
    %v229 = vpack.c.b16 %v189, %v187
    %v230 = vpack.c.b16 %v190, %v188
    %v231 = vpack.c.b16 %v193, %v191
    %v232 = vpack.c.b16 %v194, %v192
    %v233 = vpack.c.b16 %v197, %v195
    %v234 = vpack.c.b16 %v198, %v196
    %v235 = vpack.c.b16 %v201, %v199
    %v236 = vpack.c.b16 %v202, %v200
    %v237 = vpack.c.b16 %v205, %v203
    %v238 = vpack.c.b16 %v206, %v204
    %271 = vmatprep.subr.bf16.mxu0 %v222
    %272 = vmatpush1.bf16.msra.mxu0 %v221
    %273 = vmatprep.subr.bf16.mxu0 %v220
    %274 = vmatpush1.bf16.msra.mxu0 %v219
    %275 = vmatprep.subr.bf16.mxu0 %v218
    %276 = vmatpush1.bf16.msra.mxu0 %v217
    %277 = vmatprep.subr.bf16.mxu0 %v216
    %278 = vmatpush1.bf16.msra.mxu0 %v215
    %279 = vmatprep.subr.bf16.mxu0 %v214
    %280 = vmatpush1.bf16.msra.mxu0 %v213
    %281 = vmatprep.subr.bf16.mxu0 %v212
    %282 = vmatpush1.bf16.msra.mxu0 %v211
    %283 = vmatprep.subr.bf16.mxu0 %v210
    %284 = vmatpush1.bf16.msra.mxu0 %v209
    %285 = vmatprep.subr.bf16.mxu0 %v208
    %286 = vmatpush1.bf16.msra.mxu0 %v207
    %287 = vmatprep.subr.bf16.mxu0 %v238
    %288 = vmatpush2.bf16.msra.mxu0 %v237
    %289 = vmatprep.subr.bf16.mxu0 %v236
    %290 = vmatpush2.bf16.msra.mxu0 %v235
    %291 = vmatprep.subr.bf16.mxu0 %v234
    %292 = vmatpush2.bf16.msra.mxu0 %v233
    %293 = vmatprep.subr.bf16.mxu0 %v232
    %294 = vmatpush2.bf16.msra.mxu0 %v231
    %295 = vmatprep.subr.bf16.mxu0 %v230
    %296 = vmatpush2.bf16.msra.mxu0 %v229
    %297 = vmatprep.subr.bf16.mxu0 %v228
    %298 = vmatpush2.bf16.msra.mxu0 %v227
    %299 = vmatprep.subr.bf16.mxu0 %v226
    %300 = vmatpush2.bf16.msra.mxu0 %v225
    %301 = vmatprep.subr.bf16.mxu0 %v224
    %302 = vmatpush2.bf16.msra.mxu0 %v223
    %303 = vmatprep.mubr.bf16.mxu0 %v60
    %304 = vmatmul.mubr.bf16.gmra.mxu0 %v59
    %v305 = vpop.f32.mrf.mxu0
    %v306 = vadd.f32 %v104, %v305
    %v307 = vpop.f32.mrf.mxu0
    %v308 = vadd.f32 %v108, %v307
    %v309 = vpop.f32.mrf.mxu0
    %v310 = vadd.f32 %v104, %v309
    %v311 = vpop.f32.mrf.mxu0
    %v312 = vadd.f32 %v108, %v311
    %313 = vmatprep.mubr.bf16.mxu0 %v62
    %314 = vmatmul.mubr.bf16.gmra.mxu0 %v61
    %v315 = vpop.f32.mrf.mxu0
    %v316 = vadd.f32 %v104, %v315
    %v317 = vpop.f32.mrf.mxu0
    %v318 = vadd.f32 %v108, %v317
    %v319 = vpop.f32.mrf.mxu0
    %v320 = vadd.f32 %v104, %v319
    %v321 = vpop.f32.mrf.mxu0
    %v322 = vadd.f32 %v108, %v321
    %323 = vmatprep.mubr.bf16.mxu0 %v64
    %324 = vmatmul.mubr.bf16.gmra.mxu0 %v63
    %v325 = vpop.f32.mrf.mxu0
    %v326 = vadd.f32 %v104, %v325
    %v327 = vpop.f32.mrf.mxu0
    %v328 = vadd.f32 %v108, %v327
    %v329 = vpop.f32.mrf.mxu0
    %v330 = vadd.f32 %v104, %v329
    %v331 = vpop.f32.mrf.mxu0
    %v332 = vadd.f32 %v108, %v331
    %333 = vmatprep.mubr.bf16.mxu0 %v66
    %334 = vmatmul.mubr.bf16.gmra.mxu0 %v65
    %v335 = vpop.f32.mrf.mxu0
    %v336 = vadd.f32 %v104, %v335
    %v337 = vpop.f32.mrf.mxu0
    %v338 = vadd.f32 %v108, %v337
    %v339 = vpop.f32.mrf.mxu0
    %v340 = vadd.f32 %v104, %v339
    %v341 = vpop.f32.mrf.mxu0
    %v342 = vadd.f32 %v108, %v341
    %343 = vdwg.mxu0
    %v344 = vsub.f32 0.0, %v306
    %v345 = vsub.f32 0.0, %v310
    %v346 = vsub.f32 0.0, %v316
    %v347 = vsub.f32 0.0, %v320
    %v348 = vsub.f32 0.0, %v326
    %v349 = vsub.f32 0.0, %v330
    %v350 = vsub.f32 0.0, %v336
    %v351 = vsub.f32 0.0, %v340
    %v352 = vmul.f32 %v344, 1.442695
    %v353 = vpow.pop %v352
    %v354 = vmul.f32 %v345, 1.442695
    %v355 = vpow.pop %v354
    %v356 = vmul.f32 %v346, 1.442695
    %v357 = vpow.pop %v356
    %v358 = vmul.f32 %v347, 1.442695
    %v359 = vpow.pop %v358
    %v360 = vmul.f32 %v348, 1.442695
    %v361 = vpow.pop %v360
    %v362 = vmul.f32 %v349, 1.442695
    %v363 = vpow.pop %v362
    %v364 = vmul.f32 %v350, 1.442695
    %v365 = vpow.pop %v364
    %v366 = vmul.f32 %v351, 1.442695
    %v367 = vpow.pop %v366
    %v368 = vadd.f32 %v353, 1.0
    %v369 = vadd.f32 %v355, 1.0
    %v370 = vadd.f32 %v357, 1.0
    %v371 = vadd.f32 %v359, 1.0
    %v372 = vadd.f32 %v361, 1.0
    %v373 = vadd.f32 %v363, 1.0
    %v374 = vadd.f32 %v365, 1.0
    %v375 = vadd.f32 %v367, 1.0
    %v376 = vsub.f32 0.0, %v308
    %v377 = vsub.f32 0.0, %v312
    %v378 = vsub.f32 0.0, %v318
    %v379 = vsub.f32 0.0, %v322
    %v380 = vsub.f32 0.0, %v328
    %v381 = vsub.f32 0.0, %v332
    %v382 = vsub.f32 0.0, %v338
    %v383 = vsub.f32 0.0, %v342
    %v384 = vmul.f32 %v376, 1.442695
    %v385 = vpow.pop %v384
    %v386 = vmul.f32 %v377, 1.442695
    %v387 = vpow.pop %v386
    %v388 = vmul.f32 %v378, 1.442695
    %v389 = vpow.pop %v388
    %v390 = vmul.f32 %v379, 1.442695
    %v391 = vpow.pop %v390
    %v392 = vmul.f32 %v380, 1.442695
    %v393 = vpow.pop %v392
    %v394 = vmul.f32 %v381, 1.442695
    %v395 = vpow.pop %v394
    %v396 = vmul.f32 %v382, 1.442695
    %v397 = vpow.pop %v396
    %v398 = vmul.f32 %v383, 1.442695
    %v399 = vpow.pop %v398
    %v400 = vadd.f32 %v385, 1.0
    %v401 = vadd.f32 %v387, 1.0
    %v402 = vadd.f32 %v389, 1.0
    %v403 = vadd.f32 %v391, 1.0
    %v404 = vadd.f32 %v393, 1.0
    %v405 = vadd.f32 %v395, 1.0
    %v406 = vadd.f32 %v397, 1.0
    %v407 = vadd.f32 %v399, 1.0
    %v408 = vmul.f32 %v368, %v400
    %v409 = vmul.f32 %v369, %v401
    %v410 = vmul.f32 %v370, %v402
    %v411 = vmul.f32 %v371, %v403
    %v412 = vmul.f32 %v372, %v404
    %v413 = vmul.f32 %v373, %v405
    %v414 = vmul.f32 %v374, %v406
    %v415 = vmul.f32 %v375, %v407
    %v416 = vrcp.pop %v408
    %v417 = vrcp.pop %v409
    %v418 = vrcp.pop %v410
    %v419 = vrcp.pop %v411
    %v420 = vrcp.pop %v412
    %v421 = vrcp.pop %v413
    %v422 = vrcp.pop %v414
    %v423 = vrcp.pop %v415
    %424 = vst [vmem:[#allocation7] sm:$0xff] %v416
    %425 = vst [vmem:[#allocation7 + $0x8] sm:$0xff] %v417
    %426 = vst [vmem:[#allocation7 + $0x10] sm:$0xff] %v418
    %427 = vst [vmem:[#allocation7 + $0x18] sm:$0xff] %v419
    %428 = vst [vmem:[#allocation7 + $0x20] sm:$0xff] %v420
    %429 = vst [vmem:[#allocation7 + $0x28] sm:$0xff] %v421
    %430 = vst [vmem:[#allocation7 + $0x30] sm:$0xff] %v422
    %431 = vst [vmem:[#allocation7 + $0x38] sm:$0xff] %v423
    // Predicated region
    $region22: #{tpu_custom_call.1} parent=1 // pred_check
      _
    $region23: #{tpu_custom_call.1} parent=1 // pred_check_branch
      %433 = sbr.rel (0) target = $region25
    $region24: #{tpu_custom_call.1} parent=1 // pred_region
      %s435 = ssub.s32 1024, 1024
      %436 = vsyncadd [#allocation4], %s435
      %s437 = sshll.u32 [#allocation7], 4
      %s438 = int_to_ptr.vmem [resolvable:$true] %s437
      %443 = dma.vmem_to_hbm [thread:$0]  %s438, 1024, %s3, [#allocation4], 128, 128, 8
    $region25: #{tpu_custom_call.1} parent=1 // pred_fallthru
      _
    // Predicated region
    $region26: #{tpu_custom_call.1} parent=1 // pred_check
      _
    $region27: #{tpu_custom_call.1} parent=1 // pred_check_branch
      %445 = sbr.rel (0) target = $region29
    $region28: #{tpu_custom_call.1} parent=1 // pred_region
      %446 = dma.done [#allocation4], 1024
    $region29: #{tpu_custom_call.1} parent=1 // pred_fallthru
      _
    %447 = vsyncpa [#allocation3], 1
    %448 = vsyncpa [#allocation6], 1
    %449 = vsyncpa [#allocation4], 1

</llo_original>
